<compile_context>
chip_gen: v5e
topology: v5e:2x2
jax: 0.10.0
libtpu: 0.0.40
codegen_flags: <defaults>
</compile_context>

<pallas_src>
import functools
import math

import jax
import jax.numpy as jnp
from jax.experimental import pallas as pl
from jax.experimental.pallas import tpu as pltpu


def _committor_kernel(grad_ref, q_ref, labels_ref, w_ref, inv_mass_ref,
                      out_ref, acc_ref, *,
                      n_samples, n_valid_lanes, tile_l,
                      alpha, gamma, epsilon, delta_f, exp_delta_f):
    """Per-tile partial sums + final loss assembly.

    grad_ref     : (D, 8, TILE_L)  dq/dcv stripes (native dtype, cast in-kernel)
    q_ref        : (8, TILE_L)     committor guess
    labels_ref   : (8, TILE_L)     0 -> state A, 1 -> state B (float32)
    w_ref        : (8, TILE_L)     reweighting factors
    inv_mass_ref : (D,)   SMEM     (1/cell)^2 / mass  (host-folded constant)
    out_ref      : (4,)   SMEM     final losses
    acc_ref      : (8,)   SMEM     running sums/counts (0..4 used)
    """
    i = pl.program_id(0)
    d_dim = grad_ref.shape[0]

    @pl.when(i == 0)
    def _init():
        for k in range(5):
            acc_ref[k] = jnp.float32(0.0)

    # Lane-validity mask: guards the unspecified contents of the (possibly)
    # partial last block.  In-array padded samples (N % 8 != 0 fallback) are
    # already neutral via their sentinel values (w=0, labels=-1, grad=0).
    lane = jax.lax.broadcasted_iota(jnp.int32, (8, tile_l), 1) + i * tile_l
    valid = lane < n_valid_lanes                                   # (8, TILE_L)

    # Mass-weighted squared gradient, reduced over the coordinate axis.  The
    # coordinate axis is the leading (untiled) block dim, so this is D-1 dense
    # vector adds on the VPU -- no cross-lane XLU work, no MXU (review #10).
    g0 = grad_ref[0].astype(jnp.float32)
    gs = g0 * g0 * inv_mass_ref[0]
    for d in range(1, d_dim):
        gd = grad_ref[d].astype(jnp.float32)
        gs = gs + gd * gd * inv_mass_ref[d]

    q = q_ref[...]
    labels = labels_ref[...]
    w = w_ref[...]

    mask_A = (labels == 0.0) & valid
    mask_B = (labels == 1.0) & valid

    # delta_f reweighting (static Python branch on the hyperparameter, as in torch)
    if delta_f < 0.0:
        w = jnp.where(mask_B, w * exp_delta_f, w)
    elif delta_f > 0.0:
        w = jnp.where(mask_A, w * exp_delta_f, w)

    # jnp.where (select) rather than mask-multiply so stale/NaN garbage from
    # the out-of-bounds tail can never leak into the sums.
    var_term = jnp.where(valid, gs * w, 0.0)
    qq_A = jnp.where(mask_A, q * q, 0.0)
    qq_B = jnp.where(mask_B, (q - 1.0) * (q - 1.0), 0.0)
    one_A = jnp.where(mask_A, 1.0, 0.0)
    one_B = jnp.where(mask_B, 1.0, 0.0)

    # Per-tile tree reductions (hidden under the multi-MiB grad DMA); only the
    # cross-tile combine is a handful of serial scalar SMEM adds.
    acc_ref[0] = acc_ref[0] + jnp.sum(var_term)     # sum of weighted grad_square
    acc_ref[1] = acc_ref[1] + jnp.sum(qq_A)         # sum q^2 over A
    acc_ref[2] = acc_ref[2] + jnp.sum(qq_B)         # sum (q-1)^2 over B
    acc_ref[3] = acc_ref[3] + jnp.sum(one_A)        # n_A
    acc_ref[4] = acc_ref[4] + jnp.sum(one_B)        # n_B

    @pl.when(i == pl.num_programs(0) - 1)
    def _finalize():
        loss_var = acc_ref[0] / jnp.float32(n_samples)
        n_A = acc_ref[3]
        n_B = acc_ref[4]
        loss_A = jnp.where(n_A > 0.0, acc_ref[1] / jnp.maximum(n_A, 1.0), 0.0)
        loss_B = jnp.where(n_B > 0.0, acc_ref[2] / jnp.maximum(n_B, 1.0), 0.0)
        out_ref[0] = gamma * loss_var * epsilon + gamma * alpha * (loss_A + loss_B)
        out_ref[1] = gamma * loss_var
        out_ref[2] = alpha * gamma * loss_A
        out_ref[3] = alpha * gamma * loss_B


def _vmem_capacity_bytes():
    """Per-core VMEM capacity; falls back to the smallest (v7x, 64 MiB)."""
    try:
        info = pltpu.get_tpu_info()
        cap = getattr(info, "vmem_capacity_bytes", None)
        if cap:
            return int(cap)
    except Exception:
        pass
    return 64 << 20


def committor_loss_pallas(grad, q, labels, w, mass, *, alpha, gamma=10000.0,
                          epsilon=1.0, delta_f=0.0, cell=1.0,
                          grad_layout="nd", tile_lanes=None):
    """Variational committor loss.  grad is dq/dcv.

    grad_layout="dn": grad supplied as (D, N)  (preferred, zero-copy path).
    grad_layout="nd": grad supplied as (N, D)  (torch-native; one transpose).
    """
    grad = jnp.asarray(grad)
    if grad.ndim != 2:
        raise ValueError("grad must be 2-D")
    if grad_layout == "nd":
        # TODO(synk): this transpose is an extra HBM pass over the dominant
        # tensor; producers should emit grad as (D, N) and pass grad_layout="dn".
        grad = grad.T
    elif grad_layout != "dn":
        raise ValueError("grad_layout must be 'nd' or 'dn'")
    D, N = grad.shape

    # --- host-side constant folding: (1/cell)^2 / mass[:D]  (tiny (D,) array) ---
    mass_d = jnp.asarray(mass)[:D].astype(jnp.float32)
    if cell is not None:
        # cell must be a scalar or broadcastable to (D,) (clear error otherwise).
        cell_arr = jnp.broadcast_to(jnp.asarray(cell, dtype=jnp.float32), mass_d.shape)
        inv_mass_scaled = 1.0 / (cell_arr * cell_arr * mass_d)
    else:
        inv_mass_scaled = 1.0 / mass_d

    q_v = jnp.reshape(q, (-1,)).astype(jnp.float32)
    labels_v = jnp.reshape(labels, (-1,)).astype(jnp.float32)
    w_v = jnp.reshape(w, (-1,)).astype(jnp.float32)

    # --- 8-sample stripe view: (D, N) -> (D, 8, N/8), sides -> (8, N/8).  A
    # contiguous reshape is a layout-preserving bitcast, so grad stays zero-copy
    # whenever N % 8 == 0.
    n8 = ((N + 7) // 8) * 8
    if n8 != N:
        # TODO(synk): this pad copies grad once; use batches with N % 8 == 0 to
        # stay zero-copy.  Sentinels keep padded samples neutral (labels=-1, w=0).
        pad = n8 - N
        grad = jnp.pad(grad, ((0, 0), (0, pad)))
        q_v = jnp.pad(q_v, (0, pad))
        labels_v = jnp.pad(labels_v, (0, pad), constant_values=-1.0)
        w_v = jnp.pad(w_v, (0, pad))
    n_lanes = n8 // 8
    grad3 = grad.reshape(D, 8, n_lanes)
    q2 = q_v.reshape(8, n_lanes)
    labels2 = labels_v.reshape(8, n_lanes)
    w2 = w_v.reshape(8, n_lanes)

    # --- byte-budget lane-tile selection + explicit VMEM limit (per generation) ---
    grad_itemsize = grad.dtype.itemsize
    per_lane = 8 * D * grad_itemsize + 3 * 8 * 4       # one block-set, per lane
    vmem_cap = _vmem_capacity_bytes()
    if tile_lanes is None:
        budget = min(vmem_cap // 2, 40 << 20)          # double-buffered inputs
        tile_lanes = max(128, (budget // (2 * per_lane)) // 128 * 128)
    tile_lanes = int(max(128, min(tile_lanes, ((n_lanes + 127) // 128) * 128)))
    num_blocks = (n_lanes + tile_lanes - 1) // tile_lanes

    block_set_bytes = tile_lanes * per_lane
    vmem_limit = int(min(2 * block_set_bytes + (8 << 20), vmem_cap, 112 << 20))

    kernel = functools.partial(
        _committor_kernel,
        n_samples=N, n_valid_lanes=n_lanes, tile_l=tile_lanes,
        alpha=float(alpha), gamma=float(gamma), epsilon=float(epsilon),
        delta_f=float(delta_f), exp_delta_f=math.exp(float(delta_f)))

    out = pl.pallas_call(
        kernel,
        out_shape=jax.ShapeDtypeStruct((4,), jnp.float32),
        grid=(num_blocks,),
        in_specs=[
            pl.BlockSpec((D, 8, tile_lanes), lambda i: (0, 0, i)),  # grad stripes
            pl.BlockSpec((8, tile_lanes), lambda i: (0, i)),        # q
            pl.BlockSpec((8, tile_lanes), lambda i: (0, i)),        # labels
            pl.BlockSpec((8, tile_lanes), lambda i: (0, i)),        # w
            pl.BlockSpec(memory_space=pltpu.MemorySpace.SMEM),      # inv_mass (D,)
        ],
        out_specs=pl.BlockSpec(memory_space=pltpu.MemorySpace.SMEM),
        scratch_shapes=[pltpu.SMEM((8,), jnp.float32)],
        compiler_params=pltpu.CompilerParams(
            dimension_semantics=("arbitrary",),     # reduction axis
            vmem_limit_bytes=vmem_limit),
    )(grad3, q2, labels2, w2, inv_mass_scaled)

    return out[0], out[1], out[2], out[3]


class CommittorLossPallas:
    """JAX/Pallas port of CommittorLoss.forward (the loss math runs in the kernel)."""

    def __init__(self, mass, alpha, cell=1.0, gamma=10000.0, epsilon=1.0, delta_f=0.0):
        self.mass = mass
        self.alpha = alpha
        self.cell = cell
        self.gamma = gamma
        self.epsilon = epsilon
        self.delta_f = delta_f

    def __call__(self, x, q, labels, w, cv, grad, grad_layout="nd"):
        # x / cv are only used for device placement & autograd in torch.
        # TODO(synk): torch.autograd.grad(q, cv) has no Pallas equivalent; `grad`
        # is computed with jax.grad in the wrapper glue and passed in.
        return committor_loss_pallas(
            grad, q, labels, w, self.mass,
            alpha=self.alpha, gamma=self.gamma, epsilon=self.epsilon,
            delta_f=self.delta_f, cell=self.cell, grad_layout=grad_layout)


def _reference(grad, q, labels, w, mass, alpha, gamma, epsilon, delta_f, cell):
    """Pure-JAX reimplementation of torch committor_loss (sans autograd)."""
    grad = jnp.asarray(grad).astype(jnp.float32)
    N, D = grad.shape
    labels = jnp.reshape(labels, (-1,)).astype(jnp.float32)
    w = jnp.reshape(w, (-1,)).astype(jnp.float32)
    if delta_f < 0:
        w = jnp.where(labels == 1.0, w * math.exp(delta_f), w)
    elif delta_f > 0:
        w = jnp.where(labels == 0.0, w * math.exp(delta_f), w)
    g = grad if cell is None else grad / jnp.asarray(cell, jnp.float32)
    inv_mass = 1.0 / jnp.asarray(mass)[:D][None, :].astype(jnp.float32)
    gs = jnp.sum(g * g * inv_mass, axis=1, keepdims=True) * w[:, None]
    loss_var = jnp.mean(gs)
    qf = jnp.reshape(q, (-1,)).astype(jnp.float32)
    mA = labels == 0.0
    mB = labels == 1.0
    nA = jnp.sum(mA)
    nB = jnp.sum(mB)
    loss_A = jnp.where(nA > 0, jnp.sum(qf ** 2 * mA) / jnp.maximum(nA, 1), 0.0)
    loss_B = jnp.where(nB > 0, jnp.sum((qf - 1.0) ** 2 * mB) / jnp.maximum(nB, 1), 0.0)
    loss = gamma * loss_var * epsilon + gamma * alpha * (loss_A + loss_B)
    return loss, gamma * loss_var, alpha * gamma * loss_A, alpha * gamma * loss_B


if __name__ == "__main__":
    key = jax.random.PRNGKey(0)

    # per-coordinate masses: 2 atoms * 3 coordinates
    mass = jnp.repeat(jnp.array([12.011, 15.999], dtype=jnp.float32), 3)   # (6,)

    # ---- test 1: NN committor; producer emits (D, N) grad directly (zero-copy path) ----
    N, D = 256, 6
    k_cv, k_w, k_wq = jax.random.split(key, 3)
    cv = jax.random.normal(k_cv, (N, D), dtype=jnp.float32)
    x = cv                                                # NN input == cv here
    w = jnp.abs(jax.random.normal(k_w, (N,), dtype=jnp.float32)) + 0.5
    labels = (jnp.arange(N) % 2).astype(jnp.float32)      # alternating A/B states
    Wq = 0.1 * jax.random.normal(k_wq, (D, 1), dtype=jnp.float32)

    def q_scalar(cv_row):
        return jax.nn.sigmoid(cv_row @ Wq)[0]

    q = jax.nn.sigmoid(cv @ Wq)                                         # (N, 1)
    grad_dn = jax.vmap(jax.grad(q_scalar), in_axes=0, out_axes=1)(cv)   # (D, N)

    loss_mod = CommittorLossPallas(mass=mass, alpha=1.0, cell=1.0,
                                   gamma=10000.0, epsilon=1.0, delta_f=0.0)
    got = loss_mod(x, q, labels, w, cv, grad_dn, grad_layout="dn")
    jax.block_until_ready(got)
    ref = _reference(grad_dn.T, q, labels, w, mass, 1.0, 10000.0, 1.0, 0.0, 1.0)
    for a, b in zip(got, ref):
        assert jnp.allclose(a, b, rtol=1e-3, atol=1e-2), (a, b)

    # ---- test 2: bf16 grad, (N, D) fallback layout, N % 8 != 0, multi-block with
    #      partial last tile, delta_f reweighting, non-unit cell ----
    N2, D2 = 2404, 6
    k1, k2, k3 = jax.random.split(jax.random.PRNGKey(1), 3)
    grad2 = (0.05 * jax.random.normal(k1, (N2, D2), dtype=jnp.float32)).astype(jnp.bfloat16)
    q_2 = jax.nn.sigmoid(jax.random.normal(k2, (N2, 1), dtype=jnp.float32))
    labels_2 = (jnp.arange(N2) % 2).astype(jnp.float32)
    w_2 = jnp.abs(jax.random.normal(k3, (N2,), dtype=jnp.float32)) + 0.5
    got2 = committor_loss_pallas(grad2, q_2, labels_2, w_2, mass,
                                 alpha=0.5, gamma=10000.0, epsilon=2.0,
                                 delta_f=-0.3, cell=0.9, grad_layout="nd",
                                 tile_lanes=128)
    jax.block_until_ready(got2)
    ref2 = _reference(grad2.astype(jnp.float32), q_2, labels_2, w_2, mass,
                      0.5, 10000.0, 2.0, -0.3, 0.9)
    for a, b in zip(got2, ref2):
        assert jnp.allclose(a, b, rtol=1e-3, atol=1e-2), (a, b)

    print("KERNEL_OK")
</pallas_src>

<mosaic_0001>
module attributes {stable_mosaic.version = 11 : i64} {
  func.func @_committor_kernel(%arg0: i32, %arg1: memref<6x8x128xf32, #tpu.memory_space<vmem>>, %arg2: memref<8x128xf32, #tpu.memory_space<vmem>>, %arg3: memref<8x128xf32, #tpu.memory_space<vmem>>, %arg4: memref<8x128xf32, #tpu.memory_space<vmem>>, %arg5: memref<6xf32, #tpu.memory_space<smem>>, %arg6: memref<4xf32, #tpu.memory_space<smem>>, %arg7: memref<8xf32, #tpu.memory_space<smem>>) attributes {dimension_semantics = [#tpu.dimension_semantics<arbitrary>], iteration_bounds = array<i64: 1>, scalar_prefetch = 0 : i64, scratch_operands = 1 : i64, tpu.core_type = #tpu.core_type<tc>, window_params = [{transform_indices = @transform_0, window_bounds = array<i64: 6, 8, 128>}, {transform_indices = @transform_1, window_bounds = array<i64: 8, 128>}, {transform_indices = @transform_2, window_bounds = array<i64: 8, 128>}, {transform_indices = @transform_3, window_bounds = array<i64: 8, 128>}, {transform_indices = @transform_4, window_bounds = array<i64: 6>}, {transform_indices = @transform_5, window_bounds = array<i64: 4>}]} {
    %c0_i32 = arith.constant 0 : i32
    %0 = arith.cmpi eq, %arg0, %c0_i32 : i32
    %1 = arith.extui %0 : i1 to i32
    %c0_i32_0 = arith.constant 0 : i32
    %2 = arith.cmpi ne, %1, %c0_i32_0 : i32
    scf.if %2 {
      %cst_52 = arith.constant 0.000000e+00 : f32
      %c0_53 = arith.constant 0 : index
      %116 = memref.load %arg7[%c0_53] : memref<8xf32, #tpu.memory_space<smem>>
      memref.store %cst_52, %arg7[%c0_53] : memref<8xf32, #tpu.memory_space<smem>>
      %cst_54 = arith.constant 0.000000e+00 : f32
      %c1_55 = arith.constant 1 : index
      %117 = memref.load %arg7[%c1_55] : memref<8xf32, #tpu.memory_space<smem>>
      memref.store %cst_54, %arg7[%c1_55] : memref<8xf32, #tpu.memory_space<smem>>
      %cst_56 = arith.constant 0.000000e+00 : f32
      %c2_57 = arith.constant 2 : index
      %118 = memref.load %arg7[%c2_57] : memref<8xf32, #tpu.memory_space<smem>>
      memref.store %cst_56, %arg7[%c2_57] : memref<8xf32, #tpu.memory_space<smem>>
      %cst_58 = arith.constant 0.000000e+00 : f32
      %c3_59 = arith.constant 3 : index
      %119 = memref.load %arg7[%c3_59] : memref<8xf32, #tpu.memory_space<smem>>
      memref.store %cst_58, %arg7[%c3_59] : memref<8xf32, #tpu.memory_space<smem>>
      %cst_60 = arith.constant 0.000000e+00 : f32
      %c4_61 = arith.constant 4 : index
      %120 = memref.load %arg7[%c4_61] : memref<8xf32, #tpu.memory_space<smem>>
      memref.store %cst_60, %arg7[%c4_61] : memref<8xf32, #tpu.memory_space<smem>>
    } else {
    }
    %3 = tpu.iota {dimensions = array<i32: 1>} : vector<8x128xi32>
    %c128_i32 = arith.constant 128 : i32
    %4 = arith.muli %arg0, %c128_i32 : i32
    %5 = vector.broadcast %4 : i32 to vector<8x128xi32>
    %6 = arith.addi %3, %5 : vector<8x128xi32>
    %c32_i32 = arith.constant 32 : i32
    %7 = vector.broadcast %c32_i32 : i32 to vector<8x128xi32>
    %8 = arith.cmpi slt, %6, %7 : vector<8x128xi32>
    %c0 = arith.constant 0 : index
    %c0_1 = arith.constant 0 : index
    %c0_2 = arith.constant 0 : index
    %9 = vector.load %arg1[%c0, %c0_1, %c0_2] : memref<6x8x128xf32, #tpu.memory_space<vmem>>, vector<1x8x128xf32>
    %10 = vector.shape_cast %9 : vector<1x8x128xf32> to vector<8x128xf32>
    %11 = arith.mulf %10, %10 : vector<8x128xf32>
    %c0_3 = arith.constant 0 : index
    %12 = memref.load %arg5[%c0_3] : memref<6xf32, #tpu.memory_space<smem>>
    %13 = vector.broadcast %12 : f32 to vector<8x128xf32>
    %14 = arith.mulf %11, %13 : vector<8x128xf32>
    %c1 = arith.constant 1 : index
    %c0_4 = arith.constant 0 : index
    %c0_5 = arith.constant 0 : index
    %15 = vector.load %arg1[%c1, %c0_4, %c0_5] : memref<6x8x128xf32, #tpu.memory_space<vmem>>, vector<1x8x128xf32>
    %16 = vector.shape_cast %15 : vector<1x8x128xf32> to vector<8x128xf32>
    %17 = arith.mulf %16, %16 : vector<8x128xf32>
    %c1_6 = arith.constant 1 : index
    %18 = memref.load %arg5[%c1_6] : memref<6xf32, #tpu.memory_space<smem>>
    %19 = vector.broadcast %18 : f32 to vector<8x128xf32>
    %20 = arith.mulf %17, %19 : vector<8x128xf32>
    %21 = arith.addf %14, %20 : vector<8x128xf32>
    %c2 = arith.constant 2 : index
    %c0_7 = arith.constant 0 : index
    %c0_8 = arith.constant 0 : index
    %22 = vector.load %arg1[%c2, %c0_7, %c0_8] : memref<6x8x128xf32, #tpu.memory_space<vmem>>, vector<1x8x128xf32>
    %23 = vector.shape_cast %22 : vector<1x8x128xf32> to vector<8x128xf32>
    %24 = arith.mulf %23, %23 : vector<8x128xf32>
    %c2_9 = arith.constant 2 : index
    %25 = memref.load %arg5[%c2_9] : memref<6xf32, #tpu.memory_space<smem>>
    %26 = vector.broadcast %25 : f32 to vector<8x128xf32>
    %27 = arith.mulf %24, %26 : vector<8x128xf32>
    %28 = arith.addf %21, %27 : vector<8x128xf32>
    %c3 = arith.constant 3 : index
    %c0_10 = arith.constant 0 : index
    %c0_11 = arith.constant 0 : index
    %29 = vector.load %arg1[%c3, %c0_10, %c0_11] : memref<6x8x128xf32, #tpu.memory_space<vmem>>, vector<1x8x128xf32>
    %30 = vector.shape_cast %29 : vector<1x8x128xf32> to vector<8x128xf32>
    %31 = arith.mulf %30, %30 : vector<8x128xf32>
    %c3_12 = arith.constant 3 : index
    %32 = memref.load %arg5[%c3_12] : memref<6xf32, #tpu.memory_space<smem>>
    %33 = vector.broadcast %32 : f32 to vector<8x128xf32>
    %34 = arith.mulf %31, %33 : vector<8x128xf32>
    %35 = arith.addf %28, %34 : vector<8x128xf32>
    %c4 = arith.constant 4 : index
    %c0_13 = arith.constant 0 : index
    %c0_14 = arith.constant 0 : index
    %36 = vector.load %arg1[%c4, %c0_13, %c0_14] : memref<6x8x128xf32, #tpu.memory_space<vmem>>, vector<1x8x128xf32>
    %37 = vector.shape_cast %36 : vector<1x8x128xf32> to vector<8x128xf32>
    %38 = arith.mulf %37, %37 : vector<8x128xf32>
    %c4_15 = arith.constant 4 : index
    %39 = memref.load %arg5[%c4_15] : memref<6xf32, #tpu.memory_space<smem>>
    %40 = vector.broadcast %39 : f32 to vector<8x128xf32>
    %41 = arith.mulf %38, %40 : vector<8x128xf32>
    %42 = arith.addf %35, %41 : vector<8x128xf32>
    %c5 = arith.constant 5 : index
    %c0_16 = arith.constant 0 : index
    %c0_17 = arith.constant 0 : index
    %43 = vector.load %arg1[%c5, %c0_16, %c0_17] : memref<6x8x128xf32, #tpu.memory_space<vmem>>, vector<1x8x128xf32>
    %44 = vector.shape_cast %43 : vector<1x8x128xf32> to vector<8x128xf32>
    %45 = arith.mulf %44, %44 : vector<8x128xf32>
    %c5_18 = arith.constant 5 : index
    %46 = memref.load %arg5[%c5_18] : memref<6xf32, #tpu.memory_space<smem>>
    %47 = vector.broadcast %46 : f32 to vector<8x128xf32>
    %48 = arith.mulf %45, %47 : vector<8x128xf32>
    %49 = arith.addf %42, %48 : vector<8x128xf32>
    %c0_19 = arith.constant 0 : index
    %c0_20 = arith.constant 0 : index
    %50 = vector.load %arg2[%c0_19, %c0_20] : memref<8x128xf32, #tpu.memory_space<vmem>>, vector<8x128xf32>
    %c0_21 = arith.constant 0 : index
    %c0_22 = arith.constant 0 : index
    %51 = vector.load %arg3[%c0_21, %c0_22] : memref<8x128xf32, #tpu.memory_space<vmem>>, vector<8x128xf32>
    %c0_23 = arith.constant 0 : index
    %c0_24 = arith.constant 0 : index
    %52 = vector.load %arg4[%c0_23, %c0_24] : memref<8x128xf32, #tpu.memory_space<vmem>>, vector<8x128xf32>
    %cst = arith.constant 0.000000e+00 : f32
    %53 = vector.broadcast %cst : f32 to vector<8x128xf32>
    %54 = arith.cmpf oeq, %51, %53 : vector<8x128xf32>
    %55 = arith.andi %54, %8 : vector<8x128xi1>
    %cst_25 = arith.constant 1.000000e+00 : f32
    %56 = vector.broadcast %cst_25 : f32 to vector<8x128xf32>
    %57 = arith.cmpf oeq, %51, %56 : vector<8x128xf32>
    %58 = arith.andi %57, %8 : vector<8x128xi1>
    %59 = arith.mulf %49, %52 : vector<8x128xf32>
    %cst_26 = arith.constant 0.000000e+00 : f32
    %60 = vector.broadcast %cst_26 : f32 to vector<8x128xf32>
    %61 = arith.select %8, %59, %60 : vector<8x128xi1>, vector<8x128xf32>
    %62 = arith.mulf %50, %50 : vector<8x128xf32>
    %cst_27 = arith.constant 0.000000e+00 : f32
    %63 = vector.broadcast %cst_27 : f32 to vector<8x128xf32>
    %64 = arith.select %55, %62, %63 : vector<8x128xi1>, vector<8x128xf32>
    %cst_28 = arith.constant 1.000000e+00 : f32
    %65 = vector.broadcast %cst_28 : f32 to vector<8x128xf32>
    %66 = arith.subf %50, %65 : vector<8x128xf32>
    %cst_29 = arith.constant 1.000000e+00 : f32
    %67 = vector.broadcast %cst_29 : f32 to vector<8x128xf32>
    %68 = arith.subf %50, %67 : vector<8x128xf32>
    %69 = arith.mulf %66, %68 : vector<8x128xf32>
    %cst_30 = arith.constant 0.000000e+00 : f32
    %70 = vector.broadcast %cst_30 : f32 to vector<8x128xf32>
    %71 = arith.select %58, %69, %70 : vector<8x128xi1>, vector<8x128xf32>
    %cst_31 = arith.constant 1.000000e+00 : f32
    %cst_32 = arith.constant 0.000000e+00 : f32
    %72 = vector.broadcast %cst_31 : f32 to vector<8x128xf32>
    %73 = vector.broadcast %cst_32 : f32 to vector<8x128xf32>
    %74 = arith.select %55, %72, %73 : vector<8x128xi1>, vector<8x128xf32>
    %cst_33 = arith.constant 1.000000e+00 : f32
    %cst_34 = arith.constant 0.000000e+00 : f32
    %75 = vector.broadcast %cst_33 : f32 to vector<8x128xf32>
    %76 = vector.broadcast %cst_34 : f32 to vector<8x128xf32>
    %77 = arith.select %58, %75, %76 : vector<8x128xi1>, vector<8x128xf32>
    %c0_35 = arith.constant 0 : index
    %78 = memref.load %arg7[%c0_35] : memref<8xf32, #tpu.memory_space<smem>>
    %79 = vector.shape_cast %61 : vector<8x128xf32> to vector<1x8x128xf32>
    %cst_36 = arith.constant dense<0.000000e+00> : vector<1xf32>
    %80 = vector.multi_reduction <add>, %79, %cst_36 [1, 2] : vector<1x8x128xf32> to vector<1xf32>
    %81 = vector.shape_cast %80 : vector<1xf32> to vector<1x1x1xf32>
    %82 = vector.extract %81[0, 0, 0] : f32 from vector<1x1x1xf32>
    %83 = arith.addf %78, %82 : f32
    %c0_37 = arith.constant 0 : index
    %84 = memref.load %arg7[%c0_37] : memref<8xf32, #tpu.memory_space<smem>>
    memref.store %83, %arg7[%c0_37] : memref<8xf32, #tpu.memory_space<smem>>
    %c1_38 = arith.constant 1 : index
    %85 = memref.load %arg7[%c1_38] : memref<8xf32, #tpu.memory_space<smem>>
    %86 = vector.shape_cast %64 : vector<8x128xf32> to vector<1x8x128xf32>
    %cst_39 = arith.constant dense<0.000000e+00> : vector<1xf32>
    %87 = vector.multi_reduction <add>, %86, %cst_39 [1, 2] : vector<1x8x128xf32> to vector<1xf32>
    %88 = vector.shape_cast %87 : vector<1xf32> to vector<1x1x1xf32>
    %89 = vector.extract %88[0, 0, 0] : f32 from vector<1x1x1xf32>
    %90 = arith.addf %85, %89 : f32
    %c1_40 = arith.constant 1 : index
    %91 = memref.load %arg7[%c1_40] : memref<8xf32, #tpu.memory_space<smem>>
    memref.store %90, %arg7[%c1_40] : memref<8xf32, #tpu.memory_space<smem>>
    %c2_41 = arith.constant 2 : index
    %92 = memref.load %arg7[%c2_41] : memref<8xf32, #tpu.memory_space<smem>>
    %93 = vector.shape_cast %71 : vector<8x128xf32> to vector<1x8x128xf32>
    %cst_42 = arith.constant dense<0.000000e+00> : vector<1xf32>
    %94 = vector.multi_reduction <add>, %93, %cst_42 [1, 2] : vector<1x8x128xf32> to vector<1xf32>
    %95 = vector.shape_cast %94 : vector<1xf32> to vector<1x1x1xf32>
    %96 = vector.extract %95[0, 0, 0] : f32 from vector<1x1x1xf32>
    %97 = arith.addf %92, %96 : f32
    %c2_43 = arith.constant 2 : index
    %98 = memref.load %arg7[%c2_43] : memref<8xf32, #tpu.memory_space<smem>>
    memref.store %97, %arg7[%c2_43] : memref<8xf32, #tpu.memory_space<smem>>
    %c3_44 = arith.constant 3 : index
    %99 = memref.load %arg7[%c3_44] : memref<8xf32, #tpu.memory_space<smem>>
    %100 = vector.shape_cast %74 : vector<8x128xf32> to vector<1x8x128xf32>
    %cst_45 = arith.constant dense<0.000000e+00> : vector<1xf32>
    %101 = vector.multi_reduction <add>, %100, %cst_45 [1, 2] : vector<1x8x128xf32> to vector<1xf32>
    %102 = vector.shape_cast %101 : vector<1xf32> to vector<1x1x1xf32>
    %103 = vector.extract %102[0, 0, 0] : f32 from vector<1x1x1xf32>
    %104 = arith.addf %99, %103 : f32
    %c3_46 = arith.constant 3 : index
    %105 = memref.load %arg7[%c3_46] : memref<8xf32, #tpu.memory_space<smem>>
    memref.store %104, %arg7[%c3_46] : memref<8xf32, #tpu.memory_space<smem>>
    %c4_47 = arith.constant 4 : index
    %106 = memref.load %arg7[%c4_47] : memref<8xf32, #tpu.memory_space<smem>>
    %107 = vector.shape_cast %77 : vector<8x128xf32> to vector<1x8x128xf32>
    %cst_48 = arith.constant dense<0.000000e+00> : vector<1xf32>
    %108 = vector.multi_reduction <add>, %107, %cst_48 [1, 2] : vector<1x8x128xf32> to vector<1xf32>
    %109 = vector.shape_cast %108 : vector<1xf32> to vector<1x1x1xf32>
    %110 = vector.extract %109[0, 0, 0] : f32 from vector<1x1x1xf32>
    %111 = arith.addf %106, %110 : f32
    %c4_49 = arith.constant 4 : index
    %112 = memref.load %arg7[%c4_49] : memref<8xf32, #tpu.memory_space<smem>>
    memref.store %111, %arg7[%c4_49] : memref<8xf32, #tpu.memory_space<smem>>
    %c0_i32_50 = arith.constant 0 : i32
    %113 = arith.cmpi eq, %arg0, %c0_i32_50 : i32
    %114 = arith.extui %113 : i1 to i32
    %c0_i32_51 = arith.constant 0 : i32
    %115 = arith.cmpi ne, %114, %c0_i32_51 : i32
    scf.if %115 {
      %c0_52 = arith.constant 0 : index
      %116 = memref.load %arg7[%c0_52] : memref<8xf32, #tpu.memory_space<smem>>
      %cst_53 = arith.constant 2.560000e+02 : f32
      %117 = arith.divf %116, %cst_53 : f32
      %c3_54 = arith.constant 3 : index
      %118 = memref.load %arg7[%c3_54] : memref<8xf32, #tpu.memory_space<smem>>
      %c4_55 = arith.constant 4 : index
      %119 = memref.load %arg7[%c4_55] : memref<8xf32, #tpu.memory_space<smem>>
      %cst_56 = arith.constant 0.000000e+00 : f32
      %120 = arith.cmpf ogt, %118, %cst_56 : f32
      %c1_57 = arith.constant 1 : index
      %121 = memref.load %arg7[%c1_57] : memref<8xf32, #tpu.memory_space<smem>>
      %cst_58 = arith.constant 1.000000e+00 : f32
      %122 = arith.maximumf %118, %cst_58 : f32
      %123 = arith.divf %121, %122 : f32
      %cst_59 = arith.constant 0.000000e+00 : f32
      %124 = arith.select %120, %123, %cst_59 : f32
      %cst_60 = arith.constant 0.000000e+00 : f32
      %125 = arith.cmpf ogt, %119, %cst_60 : f32
      %c2_61 = arith.constant 2 : index
      %126 = memref.load %arg7[%c2_61] : memref<8xf32, #tpu.memory_space<smem>>
      %cst_62 = arith.constant 1.000000e+00 : f32
      %127 = arith.maximumf %119, %cst_62 : f32
      %128 = arith.divf %126, %127 : f32
      %cst_63 = arith.constant 0.000000e+00 : f32
      %129 = arith.select %125, %128, %cst_63 : f32
      %cst_64 = arith.constant 1.000000e+04 : f32
      %130 = arith.mulf %cst_64, %117 : f32
      %cst_65 = arith.constant 1.000000e+00 : f32
      %131 = arith.mulf %130, %cst_65 : f32
      %132 = arith.addf %124, %129 : f32
      %cst_66 = arith.constant 1.000000e+04 : f32
      %133 = arith.mulf %cst_66, %132 : f32
      %134 = arith.addf %131, %133 : f32
      %c0_67 = arith.constant 0 : index
      %135 = memref.load %arg6[%c0_67] : memref<4xf32, #tpu.memory_space<smem>>
      memref.store %134, %arg6[%c0_67] : memref<4xf32, #tpu.memory_space<smem>>
      %cst_68 = arith.constant 1.000000e+04 : f32
      %136 = arith.mulf %cst_68, %117 : f32
      %c1_69 = arith.constant 1 : index
      %137 = memref.load %arg6[%c1_69] : memref<4xf32, #tpu.memory_space<smem>>
      memref.store %136, %arg6[%c1_69] : memref<4xf32, #tpu.memory_space<smem>>
      %cst_70 = arith.constant 1.000000e+04 : f32
      %138 = arith.mulf %cst_70, %124 : f32
      %c2_71 = arith.constant 2 : index
      %139 = memref.load %arg6[%c2_71] : memref<4xf32, #tpu.memory_space<smem>>
      memref.store %138, %arg6[%c2_71] : memref<4xf32, #tpu.memory_space<smem>>
      %cst_72 = arith.constant 1.000000e+04 : f32
      %140 = arith.mulf %cst_72, %129 : f32
      %c3_73 = arith.constant 3 : index
      %141 = memref.load %arg6[%c3_73] : memref<4xf32, #tpu.memory_space<smem>>
      memref.store %140, %arg6[%c3_73] : memref<4xf32, #tpu.memory_space<smem>>
    } else {
    }
    return
  }
  func.func @transform_0(%arg0: i32) -> (i32, i32, i32) {
    %c0_i32 = arith.constant 0 : i32
    %c0_i32_0 = arith.constant 0 : i32
    %c0_i32_1 = arith.constant 0 : i32
    return %c0_i32, %c0_i32_0, %arg0 : i32, i32, i32
  }
  func.func @transform_1(%arg0: i32) -> (i32, i32) {
    %c0_i32 = arith.constant 0 : i32
    %c0_i32_0 = arith.constant 0 : i32
    return %c0_i32, %arg0 : i32, i32
  }
  func.func @transform_2(%arg0: i32) -> (i32, i32) {
    %c0_i32 = arith.constant 0 : i32
    %c0_i32_0 = arith.constant 0 : i32
    return %c0_i32, %arg0 : i32, i32
  }
  func.func @transform_3(%arg0: i32) -> (i32, i32) {
    %c0_i32 = arith.constant 0 : i32
    %c0_i32_0 = arith.constant 0 : i32
    return %c0_i32, %arg0 : i32, i32
  }
  func.func @transform_4(%arg0: i32) -> i32 {
    %c0_i32 = arith.constant 0 : i32
    %c0_i32_0 = arith.constant 0 : i32
    return %c0_i32 : i32
  }
  func.func @transform_5(%arg0: i32) -> i32 {
    %c0_i32 = arith.constant 0 : i32
    %c0_i32_0 = arith.constant 0 : i32
    return %c0_i32 : i32
  }
}

</mosaic_0001>

<llo_original>
// kernel: tpu_custom_call.1
$region0: #{tpu_custom_call.1}
  #allocation0 [shape = 'u32[]', space=smem, size = 0x4, offset = 0x4, fixed_abs, tag = 'smem constant byte address 0x4 - core index']
  #allocation1 [shape = 'u32[72,128]{1,0:T(1,128)}', space=vmem, size = 0x9000, scoped, tag = 'internal scratch']
  #allocation2 [shape = 'f32[8]{0:T(128)}', space=smem, size = 0x200, scoped, tag = 'scratch operand']
  %s0 = inlined_call_operand.hbm [shape: f32[6,8,32], index: 0, kind: input, shape index: {}]
  %s1 = inlined_call_operand.hbm [shape: f32[8,32], index: 1, kind: input, shape index: {}]
  %s2 = inlined_call_operand.hbm [shape: f32[8,32], index: 2, kind: input, shape index: {}]
  %s3 = inlined_call_operand.hbm [shape: f32[8,32], index: 3, kind: input, shape index: {}]
  %s4 = inlined_call_operand.vmem [shape: f32[6], index: 4, kind: input, shape index: {}]
  %s5 = inlined_call_operand.hbm [shape: f32[4], index: 5, kind: output, shape index: {}]
  %s6 = sld [smem:[#allocation0]]
  $region58: #{tpu_custom_call.1} parent=0
    _
  %s8 = ssub.s32 1, %s6
  %s9 = scalar_select 0, %s8, %s6
  $region1: #{tpu_custom_call.1} parent=0
    #allocation3 [shape = 'u8[24576]{0}', space=vmem, size = 0x6000, scoped, tag = 'input window, operand 0, single buffered']
    #allocation4 [shape = 's32[1]{0}', space=sflag, size = 0x4, scoped, tag = 'scoped memory for tpu_custom_call.1']
    #allocation5 [shape = 's32[1]{0}', space=sflag, size = 0x4, scoped, tag = 'scoped memory for tpu_custom_call.1']
    #allocation6 [shape = 's32[1]{0}', space=sflag, size = 0x4, scoped, tag = 'scoped memory for tpu_custom_call.1']
    #allocation7 [shape = 'u8[4096]{0}', space=vmem, size = 0x1000, scoped, tag = 'input window, operand 1, single buffered']
    #allocation8 [shape = 's32[1]{0}', space=sflag, size = 0x4, scoped, tag = 'scoped memory for tpu_custom_call.1']
    #allocation9 [shape = 'u8[4096]{0}', space=vmem, size = 0x1000, scoped, tag = 'input window, operand 2, single buffered']
    #allocation10 [shape = 'u8[4096]{0}', space=vmem, size = 0x1000, scoped, tag = 'input window, operand 3, single buffered']
    #allocation11 [shape = 's32[1]{0}', space=sflag, size = 0x4, scoped, tag = 'scoped memory for tpu_custom_call.1']
    #allocation12 [shape = 'u8[512]{0}', space=smem, size = 0x200, scoped, tag = 'input window, operand 4, single buffered']
    #allocation13 [shape = 'u8[512]{0}', space=smem, size = 0x200, scoped, tag = 'output window, operand 0, single buffered']
    %10 = vsyncpa [#allocation4], 0
    %11 = vsyncpa [#allocation8], 0
    %12 = vsyncpa [#allocation11], 0
    %13 = vsyncpa [#allocation6], 0
    %14 = vsyncpa [#allocation5], 0
    // Predicated region
    $region2: #{tpu_custom_call.1} parent=1 // pred_check
      _
    $region3: #{tpu_custom_call.1} parent=1 // pred_check_branch
      %16 = sbr.rel (0) target = $region5
    $region4: #{tpu_custom_call.1} parent=1 // pred_region
      %18 = vsyncadd [#allocation4], 0
      %s19 = sshll.u32 %s0, 4
      %s20 = int_to_ptr.hbm [resolvable:$true] %s19
      %s21 = sshll.u32 [#allocation3], 4
      %s22 = int_to_ptr.vmem [resolvable:$true] %s21
      %27 = dma.hbm_to_vmem [thread:$0]  %s20, 768, %s22, [#allocation4], 128, 128, 8
    $region5: #{tpu_custom_call.1} parent=1 // pred_fallthru
      _
    // Predicated region
    $region6: #{tpu_custom_call.1} parent=1 // pred_check
      _
    $region7: #{tpu_custom_call.1} parent=1 // pred_check_branch
      %29 = sbr.rel (0) target = $region9
    $region8: #{tpu_custom_call.1} parent=1 // pred_region
      %31 = vsyncadd [#allocation8], 0
      %s33 = sshll.u32 %s1, 4
      %s34 = int_to_ptr.hbm [resolvable:$true] %s33
      %s35 = sshll.u32 [#allocation7], 4
      %s36 = int_to_ptr.vmem [resolvable:$true] %s35
      %38 = dma.hbm_to_vmem [thread:$0]  %s34, 128, %s36, [#allocation8]
    $region9: #{tpu_custom_call.1} parent=1 // pred_fallthru
      _
    // Predicated region
    $region10: #{tpu_custom_call.1} parent=1 // pred_check
      _
    $region11: #{tpu_custom_call.1} parent=1 // pred_check_branch
      %40 = sbr.rel (0) target = $region13
    $region12: #{tpu_custom_call.1} parent=1 // pred_region
      %42 = vsyncadd [#allocation8], 0
      %s44 = sshll.u32 %s2, 4
      %s45 = int_to_ptr.hbm [resolvable:$true] %s44
      %s46 = sshll.u32 [#allocation9], 4
      %s47 = int_to_ptr.vmem [resolvable:$true] %s46
      %49 = dma.hbm_to_vmem [thread:$0]  %s45, 128, %s47, [#allocation8]
    $region13: #{tpu_custom_call.1} parent=1 // pred_fallthru
      _
    // Predicated region
    $region14: #{tpu_custom_call.1} parent=1 // pred_check
      _
    $region15: #{tpu_custom_call.1} parent=1 // pred_check_branch
      %51 = sbr.rel (0) target = $region17
    $region16: #{tpu_custom_call.1} parent=1 // pred_region
      %53 = vsyncadd [#allocation11], 0
      %s55 = sshll.u32 %s3, 4
      %s56 = int_to_ptr.hbm [resolvable:$true] %s55
      %s57 = sshll.u32 [#allocation10], 4
      %s58 = int_to_ptr.vmem [resolvable:$true] %s57
      %60 = dma.hbm_to_vmem [thread:$0]  %s56, 128, %s58, [#allocation11]
    $region17: #{tpu_custom_call.1} parent=1 // pred_fallthru
      _
    // Predicated region
    $region18: #{tpu_custom_call.1} parent=1 // pred_check
      _
    $region19: #{tpu_custom_call.1} parent=1 // pred_check_branch
      %62 = sbr.rel (0) target = $region21
    $region20: #{tpu_custom_call.1} parent=1 // pred_region
      %64 = vsyncadd [#allocation6], 0
      %s66 = sshll.u32 %s4, 4
      %s67 = int_to_ptr.vmem [resolvable:$true] %s66
      %69 = dma.vmem_to_smem %s67, 16, [#allocation12], [#allocation6]
    $region21: #{tpu_custom_call.1} parent=1 // pred_fallthru
      _
    // Predicated region
    $region22: #{tpu_custom_call.1} parent=1 // pred_check
      _
    $region23: #{tpu_custom_call.1} parent=1 // pred_check_branch
      %71 = sbr.rel (0) target = $region25
    $region24: #{tpu_custom_call.1} parent=1 // pred_region
      %73 = dma.done [#allocation4], 768
    $region25: #{tpu_custom_call.1} parent=1 // pred_fallthru
      _
    // Predicated region
    $region26: #{tpu_custom_call.1} parent=1 // pred_check
      _
    $region27: #{tpu_custom_call.1} parent=1 // pred_check_branch
      %75 = sbr.rel (0) target = $region29
    $region28: #{tpu_custom_call.1} parent=1 // pred_region
      %77 = dma.done [#allocation8], 128
    $region29: #{tpu_custom_call.1} parent=1 // pred_fallthru
      _
    // Predicated region
    $region30: #{tpu_custom_call.1} parent=1 // pred_check
      _
    $region31: #{tpu_custom_call.1} parent=1 // pred_check_branch
      %79 = sbr.rel (0) target = $region33
    $region32: #{tpu_custom_call.1} parent=1 // pred_region
      %81 = dma.done [#allocation8], 128
    $region33: #{tpu_custom_call.1} parent=1 // pred_fallthru
      _
    // Predicated region
    $region34: #{tpu_custom_call.1} parent=1 // pred_check
      _
    $region35: #{tpu_custom_call.1} parent=1 // pred_check_branch
      %83 = sbr.rel (0) target = $region37
    $region36: #{tpu_custom_call.1} parent=1 // pred_region
      %85 = dma.done [#allocation11], 128
    $region37: #{tpu_custom_call.1} parent=1 // pred_fallthru
      _
    // Predicated region
    $region38: #{tpu_custom_call.1} parent=1 // pred_check
      _
    $region39: #{tpu_custom_call.1} parent=1 // pred_check_branch
      %87 = sbr.rel (0) target = $region41
    $region40: #{tpu_custom_call.1} parent=1 // pred_region
      %89 = dma.done [#allocation6], 16
    $region41: #{tpu_custom_call.1} parent=1 // pred_fallthru
      _
    %90 = sfence
    %p91 = scmp.eq.s32.totalorder 0, 0
    // Predicated region
    $region42: #{tpu_custom_call.1} parent=1 // pred_check
      %p92 = pneg %p91
    $region43: #{tpu_custom_call.1} parent=1 // pred_check_branch
      %94 = sbr.rel (%p92) target = $region45
    $region44: #{tpu_custom_call.1} parent=1 // pred_region
      %s95 = scalar_lea.smem [#allocation2], 0
      %96 = sst [smem:[%s95]] 0.0
      %s97 = scalar_lea.smem [#allocation2], 1
      %98 = sst [smem:[%s97]] 0.0
      %s99 = scalar_lea.smem [#allocation2], 2
      %100 = sst [smem:[%s99]] 0.0
      %s101 = scalar_lea.smem [#allocation2], 3
      %102 = sst [smem:[%s101]] 0.0
      %s103 = scalar_lea.smem [#allocation2], 4
      %104 = sst [smem:[%s103]] 0.0
    $region45: #{tpu_custom_call.1} parent=1 // pred_fallthru
      _
    %v105 = vlaneseq
    %v106 = vand.u32 %v105, 127
    %s107 = smul.u32 0, 128
    %v108 = vstv %s107
    %v109 = vadd.s32 %v106, %v108
    %vm110 = vcmp.lt.s32.totalorder %v109, 32
    %v111 = vld [vmem:[#allocation3] sm:$0xff]
    %v112 = vmul.f32 %v111, %v111
    %s113 = sld [smem:[#allocation12]]
    %v114 = vstv %s113
    %v115 = vmul.f32 %v112, %v114
    %s116 = scalar_lea.vmem [#allocation3], 8
    %v117 = vld [vmem:[%s116] sm:$0xff]
    %v118 = vmul.f32 %v117, %v117
    %s119 = sld [smem:[#allocation12 + $0x1]]
    %v120 = vstv %s119
    %v121 = vmul.f32 %v118, %v120
    %v122 = vadd.f32 %v115, %v121
    %s123 = scalar_lea.vmem [#allocation3], 16
    %v124 = vld [vmem:[%s123] sm:$0xff]
    %v125 = vmul.f32 %v124, %v124
    %s126 = sld [smem:[#allocation12 + $0x2]]
    %v127 = vstv %s126
    %v128 = vmul.f32 %v125, %v127
    %v129 = vadd.f32 %v122, %v128
    %s130 = scalar_lea.vmem [#allocation3], 24
    %v131 = vld [vmem:[%s130] sm:$0xff]
    %v132 = vmul.f32 %v131, %v131
    %s133 = sld [smem:[#allocation12 + $0x3]]
    %v134 = vstv %s133
    %v135 = vmul.f32 %v132, %v134
    %v136 = vadd.f32 %v129, %v135
    %s137 = scalar_lea.vmem [#allocation3], 32
    %v138 = vld [vmem:[%s137] sm:$0xff]
    %v139 = vmul.f32 %v138, %v138
    %s140 = sld [smem:[#allocation12 + $0x4]]
    %v141 = vstv %s140
    %v142 = vmul.f32 %v139, %v141
    %v143 = vadd.f32 %v136, %v142
    %s144 = scalar_lea.vmem [#allocation3], 40
    %v145 = vld [vmem:[%s144] sm:$0xff]
    %v146 = vmul.f32 %v145, %v145
    %s147 = sld [smem:[#allocation12 + $0x5]]
    %v148 = vstv %s147
    %v149 = vmul.f32 %v146, %v148
    %v150 = vadd.f32 %v143, %v149
    %v151 = vld [vmem:[#allocation7] sm:$0xff]
    %v152 = vld [vmem:[#allocation9] sm:$0xff]
    %v153 = vld [vmem:[#allocation10] sm:$0xff]
    %vm154 = vcmp.eq.f32.partialorder %v152, 0.0
    %vm155 = vmand %vm154, %vm110
    %vm156 = vcmp.eq.f32.partialorder %v152, 1.0
    %vm157 = vmand %vm156, %vm110
    %v158 = vmul.f32 %v150, %v153
    %v159 = vsel %vm110, %v158, 0.0
    %v160 = vmul.f32 %v151, %v151
    %v161 = vsel %vm155, %v160, 0.0
    %v162 = vsub.f32 %v151, 1.0
    %v163 = vmul.f32 %v162, %v162
    %v164 = vsel %vm157, %v163, 0.0
    %v165 = vsel %vm155, 1.0, 0.0
    %v166 = vsel %vm157, 1.0, 0.0
    %s167 = sld [smem:[#allocation2]]
    %168 = vadd.xlane.f32.xlu0 %v159
    %v169 = vpop.xlane.xlu0 %168
    %v170 = vrot.slane %v169, 4
    %v171 = vadd.f32 %v169, %v170
    %v172 = vrot.slane %v171, 2
    %v173 = vadd.f32 %v171, %v172
    %v174 = vrot.slane %v173, 1
    %v175 = vadd.f32 %v173, %v174
    %s176 = vtos %v175
    %s177 = sadd.f32 %s167, %s176
    %s178 = scalar_lea.smem [#allocation2], 0
    %179 = sst [smem:[%s178]] %s177
    %s180 = sld [smem:[#allocation2 + $0x1]]
    %181 = vadd.xlane.f32.xlu0 %v161
    %v182 = vpop.xlane.xlu0 %181
    %v183 = vrot.slane %v182, 4
    %v184 = vadd.f32 %v182, %v183
    %v185 = vrot.slane %v184, 2
    %v186 = vadd.f32 %v184, %v185
    %v187 = vrot.slane %v186, 1
    %v188 = vadd.f32 %v186, %v187
    %s189 = vtos %v188
    %s190 = sadd.f32 %s180, %s189
    %s191 = scalar_lea.smem [#allocation2], 1
    %192 = sst [smem:[%s191]] %s190
    %s193 = sld [smem:[#allocation2 + $0x2]]
    %194 = vadd.xlane.f32.xlu0 %v164
    %v195 = vpop.xlane.xlu0 %194
    %v196 = vrot.slane %v195, 4
    %v197 = vadd.f32 %v195, %v196
    %v198 = vrot.slane %v197, 2
    %v199 = vadd.f32 %v197, %v198
    %v200 = vrot.slane %v199, 1
    %v201 = vadd.f32 %v199, %v200
    %s202 = vtos %v201
    %s203 = sadd.f32 %s193, %s202
    %s204 = scalar_lea.smem [#allocation2], 2
    %205 = sst [smem:[%s204]] %s203
    %s206 = sld [smem:[#allocation2 + $0x3]]
    %207 = vadd.xlane.f32.xlu0 %v165
    %v208 = vpop.xlane.xlu0 %207
    %v209 = vrot.slane %v208, 4
    %v210 = vadd.f32 %v208, %v209
    %v211 = vrot.slane %v210, 2
    %v212 = vadd.f32 %v210, %v211
    %v213 = vrot.slane %v212, 1
    %v214 = vadd.f32 %v212, %v213
    %s215 = vtos %v214
    %s216 = sadd.f32 %s206, %s215
    %s217 = scalar_lea.smem [#allocation2], 3
    %218 = sst [smem:[%s217]] %s216
    %s219 = sld [smem:[#allocation2 + $0x4]]
    %220 = vadd.xlane.f32.xlu0 %v166
    %v221 = vpop.xlane.xlu0 %220
    %v222 = vrot.slane %v221, 4
    %v223 = vadd.f32 %v221, %v222
    %v224 = vrot.slane %v223, 2
    %v225 = vadd.f32 %v223, %v224
    %v226 = vrot.slane %v225, 1
    %v227 = vadd.f32 %v225, %v226
    %s228 = vtos %v227
    %s229 = sadd.f32 %s219, %s228
    %s230 = scalar_lea.smem [#allocation2], 4
    %231 = sst [smem:[%s230]] %s229
    // Predicated region
    $region46: #{tpu_custom_call.1} parent=1 // pred_check
      %p232 = pneg %p91
    $region47: #{tpu_custom_call.1} parent=1 // pred_check_branch
      %234 = sbr.rel (%p232) target = $region49
    $region48: #{tpu_custom_call.1} parent=1 // pred_region
      %s235 = sld [smem:[#allocation2]]
      %v236 = vrcp.pop 256.0
      %v237 = vmul.f32 256.0, %v236
      %v238 = vsub.f32 1.0, %v237
      %v239 = vmul.f32 %v236, %v238
      %v240 = vadd.f32 %v236, %v239
      %vm241 = vweird.f32 %v236
      %v242 = vsel %vm241, %v236, %v240
      %s243 = vtos %v242
      %s244 = smul.f32 %s235, %s243
      %s245 = sld [smem:[#allocation2 + $0x3]]
      %s246 = sld [smem:[#allocation2 + $0x4]]
      %p247 = scmp.gt.f32.partialorder %s245, 0.0
      %s248 = sld [smem:[#allocation2 + $0x1]]
      %s249 = smax.f32 %s245, 1.0
      %v250 = vstv %s249
      %v251 = vrcp.pop %v250
      %v252 = vmul.f32 %v250, %v251
      %v253 = vsub.f32 1.0, %v252
      %v254 = vmul.f32 %v251, %v253
      %v255 = vadd.f32 %v251, %v254
      %vm256 = vweird.f32 %v250
      %vm257 = vweird.f32 %v251
      %vm258 = vmor %vm256, %vm257
      %v259 = vsel %vm258, %v251, %v255
      %v260 = vand.u32 2147483647, %v250
      %vm261 = vcmp.eq.f32.partialorder %v260, 8.507059e+37
      %v262 = vand.u32 %v250, 2147483648
      %v263 = vor.u32 1.1754944e-38, %v262
      %v264 = vsel %vm261, %v263, %v259
      %s265 = vtos %v264
      %s266 = smul.f32 %s248, %s265
      %s267 = scalar_select %p247, %s266, 0.0
      %p268 = scmp.gt.f32.partialorder %s246, 0.0
      %s269 = sld [smem:[#allocation2 + $0x2]]
      %s270 = smax.f32 %s246, 1.0
      %v271 = vstv %s270
      %v272 = vrcp.pop %v271
      %v273 = vmul.f32 %v271, %v272
      %v274 = vsub.f32 1.0, %v273
      %v275 = vmul.f32 %v272, %v274
      %v276 = vadd.f32 %v272, %v275
      %vm277 = vweird.f32 %v271
      %vm278 = vweird.f32 %v272
      %vm279 = vmor %vm277, %vm278
      %v280 = vsel %vm279, %v272, %v276
      %v281 = vand.u32 2147483647, %v271
      %vm282 = vcmp.eq.f32.partialorder %v281, 8.507059e+37
      %v283 = vand.u32 %v271, 2147483648
      %v284 = vor.u32 1.1754944e-38, %v283
      %v285 = vsel %vm282, %v284, %v280
      %s286 = vtos %v285
      %s287 = smul.f32 %s269, %s286
      %s288 = scalar_select %p268, %s287, 0.0
      %s289 = smul.f32 %s244, 10000.0
      %s290 = sadd.f32 %s267, %s288
      %s291 = smul.f32 %s290, 10000.0
      %s292 = sadd.f32 %s289, %s291
      %s293 = scalar_lea.smem [#allocation13], 0
      %294 = sst [smem:[%s293]] %s292
      %s295 = scalar_lea.smem [#allocation13], 1
      %296 = sst [smem:[%s295]] %s289
      %s297 = smul.f32 %s267, 10000.0
      %s298 = scalar_lea.smem [#allocation13], 2
      %299 = sst [smem:[%s298]] %s297
      %s300 = smul.f32 %s288, 10000.0
      %s301 = scalar_lea.smem [#allocation13], 3
      %302 = sst [smem:[%s301]] %s300
    $region49: #{tpu_custom_call.1} parent=1 // pred_fallthru
      _
    // Predicated region
    $region50: #{tpu_custom_call.1} parent=1 // pred_check
      _
    $region51: #{tpu_custom_call.1} parent=1 // pred_check_branch
      %304 = sbr.rel (0) target = $region53
    $region52: #{tpu_custom_call.1} parent=1 // pred_region
      %306 = vsyncadd [#allocation5], 0
      %s308 = sshll.u32 %s5, 4
      %s309 = int_to_ptr.hbm [resolvable:$true] %s308
      %311 = dma.smem_to_hbm [#allocation13], 16, %s309, [#allocation5]
    $region53: #{tpu_custom_call.1} parent=1 // pred_fallthru
      _
    // Predicated region
    $region54: #{tpu_custom_call.1} parent=1 // pred_check
      _
    $region55: #{tpu_custom_call.1} parent=1 // pred_check_branch
      %313 = sbr.rel (0) target = $region57
    $region56: #{tpu_custom_call.1} parent=1 // pred_region
      %315 = dma.done [#allocation5], 16
    $region57: #{tpu_custom_call.1} parent=1 // pred_fallthru
      _
    %316 = sfence
    %317 = vsyncpa [#allocation4], 1
    %318 = vsyncpa [#allocation8], 1
    %319 = vsyncpa [#allocation11], 1
    %320 = vsyncpa [#allocation5], 1
    %321 = vsyncpa [#allocation6], 1

</llo_original>
